<compile_context>
chip_gen: v7x
topology: tpu7x:2x2x1
jax: 0.10.0
libtpu: 0.0.40
codegen_flags: <defaults>
</compile_context>

<pallas_src>
import functools

import jax
import jax.numpy as jnp
from jax import lax
from jax.experimental import pallas as pl
from jax.experimental.pallas import tpu as pltpu

NUM_CLASSES = 10
PADDED_CLASSES = 128          # vreg lane width -> lane-dense class dimension
_NEG_BIG = -1e30              # plain Python float (NOT a traced constant)


def _cdiv(a, b):
    return -(-a // b)


def _round_up(a, b):
    return _cdiv(a, b) * b


def _cifar10_loss_kernel(x_ref, w_ref, b_ref, labels_ref,
                         loss_ref, correct_ref, *, batch_size, block_rows):
    """Fused linear classifier + softmax CE + correct-count for one batch tile."""
    i = pl.program_id(0)

    # In-kernel cast to bf16 right before the MXU (free under the DMA time;
    # avoids a wrapper-side extra HBM pass for f32 inputs).
    x = x_ref[...].astype(jnp.bfloat16)          # [TB, D]   bf16
    w = w_ref[...]                               # [D, 128]  bf16, zero-padded cols
    b = b_ref[...]                               # [1, 128]  f32

    # "model(inputs)": linear classifier on the MXU with f32 accumulation.
    logits = jnp.dot(x, w, preferred_element_type=jnp.float32) + b    # [TB, 128]
    tb, ncls = logits.shape

    # Mask padded class lanes so max / exp / argmax-compare ignore them.
    col = lax.broadcasted_iota(jnp.int32, (tb, ncls), 1)
    logits = jnp.where(col < NUM_CLASSES, logits, _NEG_BIG)

    labels = labels_ref[...]                     # [TB, 1] int32
    onehot = col == labels                       # [TB, 128]

    # Numerically stable log-softmax cross-entropy (== F.cross_entropy, mean).
    row_max = jnp.max(logits, axis=1, keepdims=True)                  # [TB, 1]
    shifted = logits - row_max
    lse = jnp.log(jnp.sum(jnp.exp(shifted), axis=1, keepdims=True)) + row_max
    label_logit = jnp.sum(jnp.where(onehot, logits, 0.0), axis=1, keepdims=True)
    per_example = lse - label_logit                                   # [TB, 1]

    # Mask ragged last-block pad rows out of both reductions.
    row = lax.broadcasted_iota(jnp.int32, (tb, 1), 0) + i * block_rows
    valid_row = row < batch_size
    per_example = jnp.where(valid_row, per_example, 0.0)

    # (logits.argmax(1) == labels): label logit equals the row max.
    # TODO(synk): on exact ties this counts "label logit == max" rather than
    # torch's first-index argmax; differs only on exact logit ties.
    correct = jnp.where(valid_row & (label_logit >= row_max), 1.0, 0.0)

    # Lane-dense (8, 128) per-block partials (unmasked full-vreg stores).
    loss_ref[...] = jnp.broadcast_to(jnp.sum(per_example), loss_ref.shape)
    correct_ref[...] = jnp.broadcast_to(jnp.sum(correct), correct_ref.shape)


def _vmem_capacity_bytes():
    """Physical VMEM per TensorCore; conservative 64 MiB (v7x) fallback."""
    try:
        cap = int(pltpu.get_tpu_info().vmem_capacity_bytes)
        if cap > 0:
            return cap
    except Exception:
        pass
    return 64 << 20


def cifar10_loss(inputs_nchw, labels, weight, bias, *, tb=None):
    """Returns (mean cross-entropy loss, number of correct predictions)."""
    bsz = inputs_nchw.shape[0]
    x = inputs_nchw.reshape(bsz, -1)              # [B, D] (no copy, native dtype)
    d = x.shape[1]
    x_itemsize = jnp.dtype(x.dtype).itemsize

    # Small parameter prep: pad class dim to the 128-lane vreg width.
    w_p = jnp.zeros((d, PADDED_CLASSES), jnp.bfloat16)
    w_p = w_p.at[:, :NUM_CLASSES].set(weight.astype(jnp.bfloat16))
    b_p = jnp.zeros((1, PADDED_CLASSES), jnp.float32)
    b_p = b_p.at[0, :NUM_CLASSES].set(bias.astype(jnp.float32))
    labels2d = labels.reshape(bsz, 1).astype(jnp.int32)

    # ---- Tile sizing from the actual VMEM budget (kernel is HBM-bound on
    # every generation, so the only lever is big tiles that amortize the
    # ~0.35 us fixed per-grid-step overhead). ----
    vmem_cap = _vmem_capacity_bytes()
    if tb is None:
        # Spend ~40% of physical VMEM on the double-buffered x tiles.
        x_db_budget = int(0.4 * vmem_cap)
        block_rows = x_db_budget // (2 * d * x_itemsize)
        block_rows = max(8, min(block_rows, 8192))
    else:
        block_rows = max(8, int(tb))
    block_rows = (block_rows // 8) * 8

    if block_rows >= bsz:
        if bsz >= 16:
            # Force >= 2 grid steps so ("parallel",) can shard across both
            # v7x TensorCores (one block would leave a TC idle).
            block_rows = _round_up(_cdiv(bsz, 2), 8)
        else:
            block_rows = bsz                      # single full block (any size ok)
    nblocks = _cdiv(bsz, block_rows)

    vmem_needed = (
        2 * block_rows * d * x_itemsize          # double-buffered x tiles (native dtype)
        + block_rows * d * 2                     # in-kernel bf16 cast copy
        + 2 * block_rows * 128 * 4               # labels tiles (lane-padded int32)
        + d * PADDED_CLASSES * 2                 # resident weight (bf16)
        + PADDED_CLASSES * 4                     # bias
        + 6 * block_rows * PADDED_CLASSES * 4    # logits / softmax temporaries
        + 2 * 2 * 8 * PADDED_CLASSES * 4         # double-buffered partial outputs
    )
    vmem_limit = int(min(max(int(1.3 * vmem_needed), 16 << 20),
                         int(0.75 * vmem_cap)))

    kernel = functools.partial(
        _cifar10_loss_kernel, batch_size=bsz, block_rows=block_rows)

    loss_parts, correct_parts = pl.pallas_call(
        kernel,
        grid=(nblocks,),
        in_specs=[
            pl.BlockSpec((block_rows, d), lambda i: (i, 0)),           # x tile
            pl.BlockSpec((d, PADDED_CLASSES), lambda i: (0, 0)),       # weight
            pl.BlockSpec((1, PADDED_CLASSES), lambda i: (0, 0)),       # bias
            pl.BlockSpec((block_rows, 1), lambda i: (i, 0)),           # labels
        ],
        out_specs=(
            pl.BlockSpec((None, 8, PADDED_CLASSES), lambda i: (i, 0, 0)),
            pl.BlockSpec((None, 8, PADDED_CLASSES), lambda i: (i, 0, 0)),
        ),
        out_shape=(
            jax.ShapeDtypeStruct((nblocks, 8, PADDED_CLASSES), jnp.float32),
            jax.ShapeDtypeStruct((nblocks, 8, PADDED_CLASSES), jnp.float32),
        ),
        compiler_params=pltpu.CompilerParams(
            dimension_semantics=("parallel",),
            vmem_limit_bytes=vmem_limit,
        ),
    )(x, w_p, b_p, labels2d)

    loss = jnp.sum(loss_parts[:, 0, 0]) / bsz          # true-B normalization
    correct = jnp.sum(correct_parts[:, 0, 0])
    return loss, correct


class CIFAR10LossState:
    """Python-side accuracy bookkeeping (mirrors reset/get_accuracy)."""

    def __init__(self):
        self.reset_accuracy()

    def reset_accuracy(self):
        self.total_correct = 0.0
        self.total_samples = 0

    def get_accuracy(self):
        return self.total_correct / self.total_samples

    def __call__(self, params, batch, cache_accuracy=False, tb=None):
        weight, bias = params
        inputs, labels = batch
        loss, correct = cifar10_loss(inputs, labels, weight, bias, tb=tb)
        if cache_accuracy:
            self.total_correct += float(correct)
            self.total_samples += int(labels.shape[0])
        return loss


if __name__ == "__main__":
    # Small CIFAR-like shapes: batch=16, 4 channels, 16x16 spatial, 10 classes.
    B, C, H, W = 16, 4, 16, 16
    D = C * H * W

    key = jax.random.PRNGKey(0)
    k_x, k_y, k_w, k_b = jax.random.split(key, 4)
    inputs = jax.random.normal(k_x, (B, C, H, W), dtype=jnp.float32)
    labels = jax.random.randint(k_y, (B,), 0, NUM_CLASSES, dtype=jnp.int32)
    weight = 0.05 * jax.random.normal(k_w, (D, NUM_CLASSES), dtype=jnp.float32)
    bias = 0.01 * jax.random.normal(k_b, (NUM_CLASSES,), dtype=jnp.float32)

    loss_mod = CIFAR10LossState()
    # tb=8 exercises the explicit batch grid (2 blocks) at this tiny batch.
    loss = loss_mod((weight, bias), (inputs, labels), cache_accuracy=True, tb=8)
    jax.block_until_ready(loss)
    # Auto-tiled path (derives block_rows from VMEM; still >= 2 grid blocks).
    loss_auto = loss_mod((weight, bias), (inputs, labels), cache_accuracy=False)
    jax.block_until_ready(loss_auto)

    # Pure-JAX reference (same bf16 matmul with f32 accumulation).
    x2d = inputs.reshape(B, -1).astype(jnp.bfloat16)
    logits = jnp.dot(x2d, weight.astype(jnp.bfloat16),
                     preferred_element_type=jnp.float32) + bias[None, :]
    lse = jax.scipy.special.logsumexp(logits, axis=1)
    ref_loss = float(jnp.mean(lse - logits[jnp.arange(B), labels]))
    ref_correct = float(jnp.sum(jnp.argmax(logits, axis=1) == labels))

    assert abs(float(loss) - ref_loss) < 5e-2, (float(loss), ref_loss)
    assert abs(float(loss_auto) - ref_loss) < 5e-2, (float(loss_auto), ref_loss)
    assert abs(loss_mod.total_correct - ref_correct) < 0.5, (
        loss_mod.total_correct, ref_correct)
    _ = loss_mod.get_accuracy()
    print("KERNEL_OK")
</pallas_src>

<mosaic_0001>
module attributes {stable_mosaic.version = 11 : i64} {
  func.func @_cifar10_loss_kernel(%arg0: i32, %arg1: memref<8x1024xf32, #tpu.memory_space<vmem>>, %arg2: memref<1024x128xbf16, #tpu.memory_space<vmem>>, %arg3: memref<1x128xf32, #tpu.memory_space<vmem>>, %arg4: memref<8x1xi32, #tpu.memory_space<vmem>>, %arg5: memref<1x8x128xf32, #tpu.memory_space<vmem>>, %arg6: memref<1x8x128xf32, #tpu.memory_space<vmem>>) attributes {dimension_semantics = [#tpu.dimension_semantics<parallel>], iteration_bounds = array<i64: 2>, scalar_prefetch = 0 : i64, scratch_operands = 0 : i64, tpu.core_type = #tpu.core_type<tc>, window_params = [{transform_indices = @transform_0, window_bounds = array<i64: 8, 1024>}, {pipeline_mode = #tpu.pipeline_mode<synchronous>, transform_indices = @transform_1, window_bounds = array<i64: 1024, 128>}, {pipeline_mode = #tpu.pipeline_mode<synchronous>, transform_indices = @transform_2, window_bounds = array<i64: 1, 128>}, {transform_indices = @transform_3, window_bounds = array<i64: 8, 1>}, {transform_indices = @transform_4, window_bounds = array<i64: 1, 8, 128>}, {transform_indices = @transform_5, window_bounds = array<i64: 1, 8, 128>}]} {
    %c0 = arith.constant 0 : index
    %c0_0 = arith.constant 0 : index
    %0 = vector.load %arg1[%c0, %c0_0] : memref<8x1024xf32, #tpu.memory_space<vmem>>, vector<8x1024xf32>
    %1 = arith.truncf %0 : vector<8x1024xf32> to vector<8x1024xbf16>
    %c0_1 = arith.constant 0 : index
    %c0_2 = arith.constant 0 : index
    %2 = vector.load %arg2[%c0_1, %c0_2] : memref<1024x128xbf16, #tpu.memory_space<vmem>>, vector<1024x128xbf16>
    %c0_3 = arith.constant 0 : index
    %c0_4 = arith.constant 0 : index
    %3 = vector.load %arg3[%c0_3, %c0_4] : memref<1x128xf32, #tpu.memory_space<vmem>>, vector<1x128xf32>
    %cst = arith.constant dense<0.000000e+00> : vector<8x128xf32>
    %4 = tpu.matmul %1, %2, %cst {dimension_numbers = #tpu.dot_dimension_numbers<[1], [0], [0], [1], [0, 0, 1, 1], [], []>} : vector<8x1024xbf16>, vector<1024x128xbf16>, vector<8x128xf32> -> vector<8x128xf32>
    %5 = vector.broadcast %3 : vector<1x128xf32> to vector<8x128xf32>
    %6 = arith.addf %4, %5 : vector<8x128xf32>
    %7 = tpu.iota {dimensions = array<i32: 1>} : vector<8x128xi32>
    %c10_i32 = arith.constant 10 : i32
    %8 = vector.broadcast %c10_i32 : i32 to vector<8x128xi32>
    %9 = arith.cmpi slt, %7, %8 : vector<8x128xi32>
    %cst_5 = arith.constant -1.000000e+30 : f32
    %10 = vector.broadcast %cst_5 : f32 to vector<8x128xf32>
    %11 = arith.select %9, %6, %10 : vector<8x128xi1>, vector<8x128xf32>
    %c0_6 = arith.constant 0 : index
    %c0_7 = arith.constant 0 : index
    %12 = vector.load %arg4[%c0_6, %c0_7] : memref<8x1xi32, #tpu.memory_space<vmem>>, vector<8x1xi32>
    %13 = vector.broadcast %12 : vector<8x1xi32> to vector<8x128xi32>
    %14 = arith.cmpi eq, %7, %13 : vector<8x128xi32>
    %cst_8 = arith.constant dense<0xFF800000> : vector<8xf32>
    %15 = vector.multi_reduction <maximumf>, %11, %cst_8 [1] : vector<8x128xf32> to vector<8xf32>
    %16 = vector.shape_cast %15 : vector<8xf32> to vector<8x1xf32>
    %17 = vector.broadcast %16 : vector<8x1xf32> to vector<8x128xf32>
    %18 = arith.subf %11, %17 : vector<8x128xf32>
    %19 = math.exp %18 : vector<8x128xf32>
    %cst_9 = arith.constant dense<0.000000e+00> : vector<8xf32>
    %20 = vector.multi_reduction <add>, %19, %cst_9 [1] : vector<8x128xf32> to vector<8xf32>
    %21 = vector.shape_cast %20 : vector<8xf32> to vector<8x1xf32>
    %22 = math.log %21 : vector<8x1xf32>
    %23 = arith.addf %22, %16 : vector<8x1xf32>
    %cst_10 = arith.constant 0.000000e+00 : f32
    %24 = vector.broadcast %cst_10 : f32 to vector<8x128xf32>
    %25 = arith.select %14, %11, %24 : vector<8x128xi1>, vector<8x128xf32>
    %cst_11 = arith.constant dense<0.000000e+00> : vector<8xf32>
    %26 = vector.multi_reduction <add>, %25, %cst_11 [1] : vector<8x128xf32> to vector<8xf32>
    %27 = vector.shape_cast %26 : vector<8xf32> to vector<8x1xf32>
    %28 = arith.subf %23, %27 : vector<8x1xf32>
    %29 = tpu.iota {dimensions = array<i32: 0>} : vector<8x1xi32>
    %c8_i32 = arith.constant 8 : i32
    %30 = arith.muli %arg0, %c8_i32 : i32
    %31 = vector.broadcast %30 : i32 to vector<8x1xi32>
    %32 = arith.addi %29, %31 : vector<8x1xi32>
    %c16_i32 = arith.constant 16 : i32
    %33 = vector.broadcast %c16_i32 : i32 to vector<8x1xi32>
    %34 = arith.cmpi slt, %32, %33 : vector<8x1xi32>
    %cst_12 = arith.constant 0.000000e+00 : f32
    %35 = vector.broadcast %cst_12 : f32 to vector<8x1xf32>
    %36 = arith.select %34, %28, %35 : vector<8x1xi1>, vector<8x1xf32>
    %37 = arith.cmpf oge, %27, %16 : vector<8x1xf32>
    %38 = arith.andi %34, %37 : vector<8x1xi1>
    %cst_13 = arith.constant 1.000000e+00 : f32
    %cst_14 = arith.constant 0.000000e+00 : f32
    %39 = vector.broadcast %cst_13 : f32 to vector<8x1xf32>
    %40 = vector.broadcast %cst_14 : f32 to vector<8x1xf32>
    %41 = arith.select %38, %39, %40 : vector<8x1xi1>, vector<8x1xf32>
    %42 = vector.shape_cast %36 : vector<8x1xf32> to vector<1x8x1xf32>
    %cst_15 = arith.constant dense<0.000000e+00> : vector<1xf32>
    %43 = vector.multi_reduction <add>, %42, %cst_15 [1, 2] : vector<1x8x1xf32> to vector<1xf32>
    %44 = vector.shape_cast %43 : vector<1xf32> to vector<1x1x1xf32>
    %45 = vector.extract %44[0, 0, 0] : f32 from vector<1x1x1xf32>
    %46 = vector.broadcast %45 : f32 to vector<8x128xf32>
    %c0_16 = arith.constant 0 : index
    %c0_17 = arith.constant 0 : index
    %c0_18 = arith.constant 0 : index
    %47 = vector.load %arg5[%c0_16, %c0_17, %c0_18] : memref<1x8x128xf32, #tpu.memory_space<vmem>>, vector<1x8x128xf32>
    %48 = vector.shape_cast %47 : vector<1x8x128xf32> to vector<8x128xf32>
    %49 = vector.shape_cast %46 : vector<8x128xf32> to vector<1x8x128xf32>
    tpu.vector_store %arg5[%c0_16, %c0_17, %c0_18], %49 {strides = array<i32>} : memref<1x8x128xf32, #tpu.memory_space<vmem>>, vector<1x8x128xf32>,
    %50 = vector.shape_cast %41 : vector<8x1xf32> to vector<1x8x1xf32>
    %cst_19 = arith.constant dense<0.000000e+00> : vector<1xf32>
    %51 = vector.multi_reduction <add>, %50, %cst_19 [1, 2] : vector<1x8x1xf32> to vector<1xf32>
    %52 = vector.shape_cast %51 : vector<1xf32> to vector<1x1x1xf32>
    %53 = vector.extract %52[0, 0, 0] : f32 from vector<1x1x1xf32>
    %54 = vector.broadcast %53 : f32 to vector<8x128xf32>
    %c0_20 = arith.constant 0 : index
    %c0_21 = arith.constant 0 : index
    %c0_22 = arith.constant 0 : index
    %55 = vector.load %arg6[%c0_20, %c0_21, %c0_22] : memref<1x8x128xf32, #tpu.memory_space<vmem>>, vector<1x8x128xf32>
    %56 = vector.shape_cast %55 : vector<1x8x128xf32> to vector<8x128xf32>
    %57 = vector.shape_cast %54 : vector<8x128xf32> to vector<1x8x128xf32>
    tpu.vector_store %arg6[%c0_20, %c0_21, %c0_22], %57 {strides = array<i32>} : memref<1x8x128xf32, #tpu.memory_space<vmem>>, vector<1x8x128xf32>,
    return
  }
  func.func @transform_0(%arg0: i32) -> (i32, i32) {
    %c0_i32 = arith.constant 0 : i32
    %c0_i32_0 = arith.constant 0 : i32
    return %arg0, %c0_i32 : i32, i32
  }
  func.func @transform_1(%arg0: i32) -> (i32, i32) {
    %c0_i32 = arith.constant 0 : i32
    %c0_i32_0 = arith.constant 0 : i32
    %c0_i32_1 = arith.constant 0 : i32
    return %c0_i32, %c0_i32_0 : i32, i32
  }
  func.func @transform_2(%arg0: i32) -> (i32, i32) {
    %c0_i32 = arith.constant 0 : i32
    %c0_i32_0 = arith.constant 0 : i32
    %c0_i32_1 = arith.constant 0 : i32
    return %c0_i32, %c0_i32_0 : i32, i32
  }
  func.func @transform_3(%arg0: i32) -> (i32, i32) {
    %c0_i32 = arith.constant 0 : i32
    %c0_i32_0 = arith.constant 0 : i32
    return %arg0, %c0_i32 : i32, i32
  }
  func.func @transform_4(%arg0: i32) -> (i32, i32, i32) {
    %c0_i32 = arith.constant 0 : i32
    %c0_i32_0 = arith.constant 0 : i32
    %c0_i32_1 = arith.constant 0 : i32
    return %arg0, %c0_i32, %c0_i32_0 : i32, i32, i32
  }
  func.func @transform_5(%arg0: i32) -> (i32, i32, i32) {
    %c0_i32 = arith.constant 0 : i32
    %c0_i32_0 = arith.constant 0 : i32
    %c0_i32_1 = arith.constant 0 : i32
    return %arg0, %c0_i32, %c0_i32_0 : i32, i32, i32
  }
}

</mosaic_0001>

<llo_original>
// kernel: tpu_custom_call.1
$region0: #{tpu_custom_call.1}
  #allocation0 [shape = 'u32[]', space=smem, size = 0x4, offset = 0x4, fixed_abs, tag = 'smem constant byte address 0x4 - core index']
  #allocation1 [shape = 'u32[144,128]{1,0:T(1,128)}', space=vmem, size = 0x12000, scoped, tag = 'internal scratch']
  %s0 = inlined_call_operand.hbm [shape: f32[16,1024], index: 0, kind: input, shape index: {}]
  %s1 = inlined_call_operand.hbm [shape: bf16[1024,128], index: 1, kind: input, shape index: {}]
  %s2 = inlined_call_operand.vmem [shape: f32[1,128], index: 2, kind: input, shape index: {}]
  %s3 = inlined_call_operand.vmem [shape: s32[16,1], index: 3, kind: input, shape index: {}]
  %s4 = inlined_call_operand.hbm [shape: f32[2,8,128], index: 4, kind: output, shape index: {0}]
  %s5 = inlined_call_operand.hbm [shape: f32[2,8,128], index: 5, kind: output, shape index: {1}]
  %6 = xla_tuple %s4, %s5
  %s7 = sld [smem:[#allocation0]]
  $region65: #{tpu_custom_call.1} parent=0
    _
  %s9 = ssub.s32 1, %s7
  %s10 = scalar_select 0, %s9, %s7
  $region1: #{tpu_custom_call.1} parent=0
    #allocation2 [shape = 'u8[65536]{0}', space=vmem, size = 0x10000, scoped, tag = 'input window, operand 0']
    #allocation3 [shape = 's32[2]{0}', space=sflag, size = 0x8, scoped, tag = 'scoped memory for tpu_custom_call.1']
    #allocation4 [shape = 's32[2]{0}', space=sflag, size = 0x8, scoped, tag = 'scoped memory for tpu_custom_call.1']
    #allocation5 [shape = 'u8[262144]{0}', space=vmem, size = 0x40000, scoped, tag = 'input window, operand 1, single buffered']
    #allocation6 [shape = 's32[1]{0}', space=sflag, size = 0x4, scoped, tag = 'scoped memory for tpu_custom_call.1']
    #allocation7 [shape = 'u8[8192]{0}', space=vmem, size = 0x2000, scoped, tag = 'output window, operand 0']
    #allocation8 [shape = 'u8[8192]{0}', space=vmem, size = 0x2000, scoped, tag = 'output window, operand 1']
    #allocation9 [shape = 's32[2]{0}', space=sflag, size = 0x8, scoped, tag = 'scoped memory for tpu_custom_call.1']
    %11 = vsyncpa [#allocation3], 0
    %s12 = scalar_lea.sflag [#allocation3], 1
    %13 = vsyncpa %s12, 0
    %14 = vsyncpa [#allocation6], 0
    %15 = vsyncpa [#allocation4], 0
    %s16 = scalar_lea.sflag [#allocation4], 1
    %17 = vsyncpa %s16, 0
    %18 = vsyncpa [#allocation9], 0
    %s19 = scalar_lea.sflag [#allocation9], 1
    %20 = vsyncpa %s19, 0
    loop: start=0, step=1, limit=4
    $region2: #{tpu_custom_call.1} parent=1 // loop_pre_header
      _
    $region3: #{tpu_custom_call.1} parent=1 // loop_header
      %s22 = sphi 0, %s26
      %p23 = scmp.ge.s32.totalorder %s22, 4
      %s32 = sphi 0, %s34
      %s35 = sphi 0, %s32
      %s36 = sphi 0, %s35
      %s52 = sphi 0, %s36
      %s56 = sphi 0, %s56
      %s58 = sphi 0, %s56
      %s59 = sphi 0, %s58
      %s73 = sphi 0, %s59
      %s77 = sphi 0, %s77
      %s79 = sphi 0, %s77
      %s80 = sphi 0, %s79
      %s94 = sphi 0, %s80
      %s100 = sphi 0, %s102
      %s103 = sphi 0, %s100
      %s104 = sphi 0, %s103
      %s120 = sphi 0, %s104
      %s126 = sphi 0, %s128
      %s129 = sphi 0, %s126
      %s130 = sphi 0, %s129
      %s146 = sphi 0, %s130
      %s152 = sphi 0, %s154
      %s155 = sphi 0, %s152
      %s156 = sphi 0, %s155
      %s172 = sphi 0, %s156
    $region4: #{tpu_custom_call.1} parent=1 // loop_header_branch
      %25 = sbr.rel (%p23) target = $region8
    $region5: #{tpu_custom_call.1} parent=1 // loop_body
      %s27 = ssub.s32 %s22, 1
      %s28 = ssub.s32 %s22, 2
      %s29 = sadd.s32 %s22, 1
      %s30 = ssub.s32 %s22, %s29
      %p31 = scmp.eq.s32.totalorder %s30, 0
      %s33 = sadd.s32 %s32, 1
      %s34 = scalar_select %p31, %s32, %s33
      %p37 = pneg %p31
      %p38 = scmp.eq.s32.totalorder %s22, 1
      %p39 = por %p37, %p38
      %p40 = scmp.ne.s32.totalorder %s32, %s35
      %p41 = scmp.eq.s32.totalorder %s22, 0
      %p42 = por %p40, %p41
      %p43 = scmp.ne.s32.totalorder %s32, %s35
      %p44 = scmp.eq.s32.totalorder %s27, 1
      %p45 = por %p43, %p44
      %p46 = scmp.ne.s32.totalorder %s35, %s36
      %p47 = scmp.eq.s32.totalorder %s27, 0
      %p48 = por %p46, %p47
      %p49 = scmp.ne.s32.totalorder %s35, %s36
      %p50 = scmp.eq.s32.totalorder %s28, 1
      %p51 = por %p49, %p50
      %p53 = scmp.ne.s32.totalorder %s36, %s52
      %p54 = scmp.eq.s32.totalorder %s28, 0
      %p55 = por %p53, %p54
      %s57 = sadd.s32 %s56, 1
      %p60 = scmp.eq.s32.totalorder %s22, 1
      %p61 = scmp.ne.s32.totalorder %s56, %s58
      %p62 = scmp.eq.s32.totalorder %s22, 0
      %p63 = por %p61, %p62
      %p64 = scmp.ne.s32.totalorder %s56, %s58
      %p65 = scmp.eq.s32.totalorder %s27, 1
      %p66 = por %p64, %p65
      %p67 = scmp.ne.s32.totalorder %s58, %s59
      %p68 = scmp.eq.s32.totalorder %s27, 0
      %p69 = por %p67, %p68
      %p70 = scmp.ne.s32.totalorder %s58, %s59
      %p71 = scmp.eq.s32.totalorder %s28, 1
      %p72 = por %p70, %p71
      %p74 = scmp.ne.s32.totalorder %s59, %s73
      %p75 = scmp.eq.s32.totalorder %s28, 0
      %p76 = por %p74, %p75
      %s78 = sadd.s32 %s77, 1
      %p81 = scmp.eq.s32.totalorder %s22, 1
      %p82 = scmp.ne.s32.totalorder %s77, %s79
      %p83 = scmp.eq.s32.totalorder %s22, 0
      %p84 = por %p82, %p83
      %p85 = scmp.ne.s32.totalorder %s77, %s79
      %p86 = scmp.eq.s32.totalorder %s27, 1
      %p87 = por %p85, %p86
      %p88 = scmp.ne.s32.totalorder %s79, %s80
      %p89 = scmp.eq.s32.totalorder %s27, 0
      %p90 = por %p88, %p89
      %p91 = scmp.ne.s32.totalorder %s79, %s80
      %p92 = scmp.eq.s32.totalorder %s28, 1
      %p93 = por %p91, %p92
      %p95 = scmp.ne.s32.totalorder %s80, %s94
      %p96 = scmp.eq.s32.totalorder %s28, 0
      %p97 = por %p95, %p96
      %s98 = ssub.s32 %s22, %s29
      %p99 = scmp.eq.s32.totalorder %s98, 0
      %s101 = sadd.s32 %s100, 1
      %s102 = scalar_select %p99, %s100, %s101
      %p105 = pneg %p99
      %p106 = scmp.eq.s32.totalorder %s22, 1
      %p107 = por %p105, %p106
      %p108 = scmp.ne.s32.totalorder %s100, %s103
      %p109 = scmp.eq.s32.totalorder %s22, 0
      %p110 = por %p108, %p109
      %p111 = scmp.ne.s32.totalorder %s100, %s103
      %p112 = scmp.eq.s32.totalorder %s27, 1
      %p113 = por %p111, %p112
      %p114 = scmp.ne.s32.totalorder %s103, %s104
      %p115 = scmp.eq.s32.totalorder %s27, 0
      %p116 = por %p114, %p115
      %p117 = scmp.ne.s32.totalorder %s103, %s104
      %p118 = scmp.eq.s32.totalorder %s28, 1
      %p119 = por %p117, %p118
      %p121 = scmp.ne.s32.totalorder %s104, %s120
      %p122 = scmp.eq.s32.totalorder %s28, 0
      %p123 = por %p121, %p122
      %s124 = ssub.s32 %s22, %s29
      %p125 = scmp.eq.s32.totalorder %s124, 0
      %s127 = sadd.s32 %s126, 1
      %s128 = scalar_select %p125, %s126, %s127
      %p131 = pneg %p125
      %p132 = scmp.eq.s32.totalorder %s22, 1
      %p133 = por %p131, %p132
      %p134 = scmp.ne.s32.totalorder %s126, %s129
      %p135 = scmp.eq.s32.totalorder %s22, 0
      %p136 = por %p134, %p135
      %p137 = scmp.ne.s32.totalorder %s126, %s129
      %p138 = scmp.eq.s32.totalorder %s27, 1
      %p139 = por %p137, %p138
      %p140 = scmp.ne.s32.totalorder %s129, %s130
      %p141 = scmp.eq.s32.totalorder %s27, 0
      %p142 = por %p140, %p141
      %p143 = scmp.ne.s32.totalorder %s129, %s130
      %p144 = scmp.eq.s32.totalorder %s28, 1
      %p145 = por %p143, %p144
      %p147 = scmp.ne.s32.totalorder %s130, %s146
      %p148 = scmp.eq.s32.totalorder %s28, 0
      %p149 = por %p147, %p148
      %s150 = ssub.s32 %s22, %s29
      %p151 = scmp.eq.s32.totalorder %s150, 0
      %s153 = sadd.s32 %s152, 1
      %s154 = scalar_select %p151, %s152, %s153
      %p157 = pneg %p151
      %p158 = scmp.eq.s32.totalorder %s22, 1
      %p159 = por %p157, %p158
      %p160 = scmp.ne.s32.totalorder %s152, %s155
      %p161 = scmp.eq.s32.totalorder %s22, 0
      %p162 = por %p160, %p161
      %p163 = scmp.ne.s32.totalorder %s152, %s155
      %p164 = scmp.eq.s32.totalorder %s27, 1
      %p165 = por %p163, %p164
      %p166 = scmp.ne.s32.totalorder %s155, %s156
      %p167 = scmp.eq.s32.totalorder %s27, 0
      %p168 = por %p166, %p167
      %p169 = scmp.ne.s32.totalorder %s155, %s156
      %p170 = scmp.eq.s32.totalorder %s28, 1
      %p171 = por %p169, %p170
      %p173 = scmp.ne.s32.totalorder %s156, %s172
      %p174 = scmp.eq.s32.totalorder %s28, 0
      %p175 = por %p173, %p174
      %p176 = scmp.le.s32.totalorder 1, %s22
      %p177 = scmp.lt.s32.totalorder %s22, 3
      %p178 = pnand %p176, %p177
      %p179 = pneg %p178
      // Predicated region
      $region9: #{tpu_custom_call.1} parent=5 // pred_check
        _
      $region10: #{tpu_custom_call.1} parent=5 // pred_check_branch
        %181 = sbr.rel (%p178) target = $region12
      $region11: #{tpu_custom_call.1} parent=5 // pred_region
        %s182 = ssub.s32 %s22, 1
        // Predicated region
        $region13: #{tpu_custom_call.1} parent=11 // pred_check
          %p183 = pneg %p69
        $region14: #{tpu_custom_call.1} parent=11 // pred_check_branch
          %185 = sbr.rel (%p183) target = $region16
        $region15: #{tpu_custom_call.1} parent=11 // pred_region
          %s187 = ssub.s32 8192, 8192
          %188 = vsyncadd [#allocation6], %s187
          %s189 = sshll.u32 [#allocation5], 4
          %s190 = int_to_ptr.vmem [resolvable:$true] %s189
          %195 = dma.hbm_to_vmem [thread:$0]  %s1, 8192, %s190, [#allocation6], 64, 64, 4
        $region16: #{tpu_custom_call.1} parent=11 // pred_fallthru
          _
        // Predicated region
        $region17: #{tpu_custom_call.1} parent=11 // pred_check
          %p196 = pneg %p90
        $region18: #{tpu_custom_call.1} parent=11 // pred_check_branch
          %198 = sbr.rel (%p196) target = $region20
        $region19: #{tpu_custom_call.1} parent=11 // pred_region
          _
        $region20: #{tpu_custom_call.1} parent=11 // pred_fallthru
          _
      $region12: #{tpu_custom_call.1} parent=5 // pred_fallthru
        _
      %p199 = scmp.lt.s32.totalorder %s22, 2
      // Predicated region
      $region21: #{tpu_custom_call.1} parent=5 // pred_check
        %p200 = pneg %p199
      $region22: #{tpu_custom_call.1} parent=5 // pred_check_branch
        %202 = sbr.rel (%p200) target = $region24
      $region23: #{tpu_custom_call.1} parent=5 // pred_region
        // Predicated region
        $region25: #{tpu_custom_call.1} parent=23 // pred_check
          %p203 = pneg %p42
        $region26: #{tpu_custom_call.1} parent=23 // pred_check_branch
          %205 = sbr.rel (%p203) target = $region28
        $region27: #{tpu_custom_call.1} parent=23 // pred_region
          %s206 = sand.u32 %s32, 1
          %s207 = scalar_lea.sflag [#allocation3], %s206
          %s208 = sand.u32 %s32, 1
          %s209 = smul.addr %s208, 64
          %s210 = scalar_lea.vmem [#allocation2], %s209
          %s212 = ssub.s32 1024, 1024
          %213 = vsyncadd %s207, %s212
          %s214 = smul.addr %s22, 8
          %s215 = smul.addr %s214, 128
          %s216 = scalar_lea.hbm %s0, %s215
          %s218 = sshll.u32 %s210, 4
          %s219 = int_to_ptr.vmem [resolvable:$true] %s218
          %221 = dma.hbm_to_vmem [thread:$0]  %s216, 1024, %s219, %s207
        $region28: #{tpu_custom_call.1} parent=23 // pred_fallthru
          _
        // Predicated region
        $region29: #{tpu_custom_call.1} parent=23 // pred_check
          %p222 = pneg %p110
        $region30: #{tpu_custom_call.1} parent=23 // pred_check_branch
          %224 = sbr.rel (%p222) target = $region32
        $region31: #{tpu_custom_call.1} parent=23 // pred_region
          %p225 = scmp.lt.s32.totalorder %s22, 1
          %s226 = scalar_select %p225, %s22, 1
          %s227 = smul.addr %s226, 8
          %s228 = scalar_lea.vmem %s3, %s227
        $region32: #{tpu_custom_call.1} parent=23 // pred_fallthru
          _
      $region24: #{tpu_custom_call.1} parent=5 // pred_fallthru
        _
      %p229 = scmp.le.s32.totalorder 1, %s22
      %p230 = scmp.lt.s32.totalorder %s22, 3
      %p231 = pnand %p229, %p230
      %p232 = pneg %p231
      // Predicated region
      $region33: #{tpu_custom_call.1} parent=5 // pred_check
        _
      $region34: #{tpu_custom_call.1} parent=5 // pred_check_branch
        %234 = sbr.rel (%p231) target = $region36
      $region35: #{tpu_custom_call.1} parent=5 // pred_region
        %s235 = ssub.s32 %s22, 1
        %s236 = sand.u32 %s35, 1
        %s237 = scalar_lea.sflag [#allocation3], %s236
        %s238 = sand.u32 %s35, 1
        %s239 = smul.addr %s238, 64
        %s240 = scalar_lea.vmem [#allocation2], %s239
        // Predicated region
        $region37: #{tpu_custom_call.1} parent=35 // pred_check
          %p241 = pneg %p48
        $region38: #{tpu_custom_call.1} parent=35 // pred_check_branch
          %243 = sbr.rel (%p241) target = $region40
        $region39: #{tpu_custom_call.1} parent=35 // pred_region
          %244 = dma.done %s237, 1024
        $region40: #{tpu_custom_call.1} parent=35 // pred_fallthru
          _
        // Predicated region
        $region41: #{tpu_custom_call.1} parent=35 // pred_check
          %p245 = pneg %p69
        $region42: #{tpu_custom_call.1} parent=35 // pred_check_branch
          %247 = sbr.rel (%p245) target = $region44
        $region43: #{tpu_custom_call.1} parent=35 // pred_region
          %248 = dma.done [#allocation6], 8192
        $region44: #{tpu_custom_call.1} parent=35 // pred_fallthru
          _
        %s249 = sand.u32 %s35, 1
        %s250 = scalar_lea.sflag [#allocation3], %s249
        %s251 = sand.u32 %s35, 1
        %s252 = smul.addr %s251, 64
        %s253 = scalar_lea.vmem [#allocation2], %s252
        %p254 = pneg %p48
        %p255 = pneg %p45
        %p256 = pneg %p69
        %p257 = pneg %p66
        %p258 = pneg %p90
        %p259 = pneg %p87
        %p260 = scmp.lt.s32.totalorder %s27, 1
        %s261 = scalar_select %p260, %s27, 1
        %s262 = smul.addr %s261, 8
        %s263 = scalar_lea.vmem %s3, %s262
        %p264 = pneg %p116
        %p265 = pneg %p113
        %p266 = pneg %p142
        %p267 = pneg %p139
        %s268 = sand.u32 %s129, 1
        %s269 = scalar_lea.sflag [#allocation4], %s268
        %s270 = sand.u32 %s129, 1
        %s271 = smul.addr %s270, 8
        %s272 = scalar_lea.vmem [#allocation7], %s271
        %p273 = pneg %p168
        %p274 = pneg %p165
        %s275 = sand.u32 %s155, 1
        %s276 = scalar_lea.sflag [#allocation9], %s275
        %s277 = sand.u32 %s155, 1
        %s278 = smul.addr %s277, 8
        %s279 = scalar_lea.vmem [#allocation8], %s278
        %p280 = scmp.lt.s32.totalorder %s27, 1
        %s281 = scalar_select %p280, %s27, 1
        %s282 = smul.addr %s281, 8
        %s283 = scalar_lea.vmem %s3, %s282
        %v285 = vld [vmem:[%s240] sm:$0xff]
        %v286 = vld [vmem:[%s240 + $0x8] sm:$0xff]
        %v287 = vld [vmem:[%s240 + $0x10] sm:$0xff]
        %v288 = vld [vmem:[%s240 + $0x18] sm:$0xff]
        %v289 = vld [vmem:[%s240 + $0x20] sm:$0xff]
        %v290 = vld [vmem:[%s240 + $0x28] sm:$0xff]
        %v291 = vld [vmem:[%s240 + $0x30] sm:$0xff]
        %v292 = vld [vmem:[%s240 + $0x38] sm:$0xff]
        %v293 = vpack.c.bf16 %v285, %v285
        %v294 = vpack.c.bf16 %v286, %v286
        %v295 = vpack.c.bf16 %v287, %v287
        %v296 = vpack.c.bf16 %v288, %v288
        %v297 = vpack.c.bf16 %v289, %v289
        %v298 = vpack.c.bf16 %v290, %v290
        %v299 = vpack.c.bf16 %v291, %v291
        %v300 = vpack.c.bf16 %v292, %v292
        %v301 = vld [vmem:[#allocation5] sm:$0xf]
        %v302 = vld [vmem:[#allocation5 + $0x4] sm:$0xf]
        %v303 = vld [vmem:[#allocation5 + $0x8] sm:$0xf]
        %v304 = vld [vmem:[#allocation5 + $0xc] sm:$0xf]
        %v305 = vld [vmem:[#allocation5 + $0x10] sm:$0xf]
        %v306 = vld [vmem:[#allocation5 + $0x14] sm:$0xf]
        %v307 = vld [vmem:[#allocation5 + $0x18] sm:$0xf]
        %v308 = vld [vmem:[#allocation5 + $0x1c] sm:$0xf]
        %v309 = vld [vmem:[#allocation5 + $0x20] sm:$0xf]
        %v310 = vld [vmem:[#allocation5 + $0x24] sm:$0xf]
        %v311 = vld [vmem:[#allocation5 + $0x28] sm:$0xf]
        %v312 = vld [vmem:[#allocation5 + $0x2c] sm:$0xf]
        %v313 = vld [vmem:[#allocation5 + $0x30] sm:$0xf]
        %v314 = vld [vmem:[#allocation5 + $0x34] sm:$0xf]
        %v315 = vld [vmem:[#allocation5 + $0x38] sm:$0xf]
        %v316 = vld [vmem:[#allocation5 + $0x3c] sm:$0xf]
        %v317 = vld [vmem:[#allocation5 + $0x40] sm:$0xf]
        %v318 = vld [vmem:[#allocation5 + $0x44] sm:$0xf]
        %v319 = vld [vmem:[#allocation5 + $0x48] sm:$0xf]
        %v320 = vld [vmem:[#allocation5 + $0x4c] sm:$0xf]
        %v321 = vld [vmem:[#allocation5 + $0x50] sm:$0xf]
        %v322 = vld [vmem:[#allocation5 + $0x54] sm:$0xf]
        %v323 = vld [vmem:[#allocation5 + $0x58] sm:$0xf]
        %v324 = vld [vmem:[#allocation5 + $0x5c] sm:$0xf]
        %v325 = vld [vmem:[#allocation5 + $0x60] sm:$0xf]
        %v326 = vld [vmem:[#allocation5 + $0x64] sm:$0xf]
        %v327 = vld [vmem:[#allocation5 + $0x68] sm:$0xf]
        %v328 = vld [vmem:[#allocation5 + $0x6c] sm:$0xf]
        %v329 = vld [vmem:[#allocation5 + $0x70] sm:$0xf]
        %v330 = vld [vmem:[#allocation5 + $0x74] sm:$0xf]
        %v331 = vld [vmem:[#allocation5 + $0x78] sm:$0xf]
        %v332 = vld [vmem:[#allocation5 + $0x7c] sm:$0xf]
        %v333 = vld [vmem:[#allocation5 + $0x80] sm:$0xf]
        %v334 = vld [vmem:[#allocation5 + $0x84] sm:$0xf]
        %v335 = vld [vmem:[#allocation5 + $0x88] sm:$0xf]
        %v336 = vld [vmem:[#allocation5 + $0x8c] sm:$0xf]
        %v337 = vld [vmem:[#allocation5 + $0x90] sm:$0xf]
        %v338 = vld [vmem:[#allocation5 + $0x94] sm:$0xf]
        %v339 = vld [vmem:[#allocation5 + $0x98] sm:$0xf]
        %v340 = vld [vmem:[#allocation5 + $0x9c] sm:$0xf]
        %v341 = vld [vmem:[#allocation5 + $0xa0] sm:$0xf]
        %v342 = vld [vmem:[#allocation5 + $0xa4] sm:$0xf]
        %v343 = vld [vmem:[#allocation5 + $0xa8] sm:$0xf]
        %v344 = vld [vmem:[#allocation5 + $0xac] sm:$0xf]
        %v345 = vld [vmem:[#allocation5 + $0xb0] sm:$0xf]
        %v346 = vld [vmem:[#allocation5 + $0xb4] sm:$0xf]
        %v347 = vld [vmem:[#allocation5 + $0xb8] sm:$0xf]
        %v348 = vld [vmem:[#allocation5 + $0xbc] sm:$0xf]
        %v349 = vld [vmem:[#allocation5 + $0xc0] sm:$0xf]
        %v350 = vld [vmem:[#allocation5 + $0xc4] sm:$0xf]
        %v351 = vld [vmem:[#allocation5 + $0xc8] sm:$0xf]
        %v352 = vld [vmem:[#allocation5 + $0xcc] sm:$0xf]
        %v353 = vld [vmem:[#allocation5 + $0xd0] sm:$0xf]
        %v354 = vld [vmem:[#allocation5 + $0xd4] sm:$0xf]
        %v355 = vld [vmem:[#allocation5 + $0xd8] sm:$0xf]
        %v356 = vld [vmem:[#allocation5 + $0xdc] sm:$0xf]
        %v357 = vld [vmem:[#allocation5 + $0xe0] sm:$0xf]
        %v358 = vld [vmem:[#allocation5 + $0xe4] sm:$0xf]
        %v359 = vld [vmem:[#allocation5 + $0xe8] sm:$0xf]
        %v360 = vld [vmem:[#allocation5 + $0xec] sm:$0xf]
        %v361 = vld [vmem:[#allocation5 + $0xf0] sm:$0xf]
        %v362 = vld [vmem:[#allocation5 + $0xf4] sm:$0xf]
        %v363 = vld [vmem:[#allocation5 + $0xf8] sm:$0xf]
        %v364 = vld [vmem:[#allocation5 + $0xfc] sm:$0xf]
        %v365 = vld [vmem:[#allocation5 + $0x100] sm:$0xf]
        %v366 = vld [vmem:[#allocation5 + $0x104] sm:$0xf]
        %v367 = vld [vmem:[#allocation5 + $0x108] sm:$0xf]
        %v368 = vld [vmem:[#allocation5 + $0x10c] sm:$0xf]
        %v369 = vld [vmem:[#allocation5 + $0x110] sm:$0xf]
        %v370 = vld [vmem:[#allocation5 + $0x114] sm:$0xf]
        %v371 = vld [vmem:[#allocation5 + $0x118] sm:$0xf]
        %v372 = vld [vmem:[#allocation5 + $0x11c] sm:$0xf]
        %v373 = vld [vmem:[#allocation5 + $0x120] sm:$0xf]
        %v374 = vld [vmem:[#allocation5 + $0x124] sm:$0xf]
        %v375 = vld [vmem:[#allocation5 + $0x128] sm:$0xf]
        %v376 = vld [vmem:[#allocation5 + $0x12c] sm:$0xf]
        %v377 = vld [vmem:[#allocation5 + $0x130] sm:$0xf]
        %v378 = vld [vmem:[#allocation5 + $0x134] sm:$0xf]
        %v379 = vld [vmem:[#allocation5 + $0x138] sm:$0xf]
        %v380 = vld [vmem:[#allocation5 + $0x13c] sm:$0xf]
        %v381 = vld [vmem:[#allocation5 + $0x140] sm:$0xf]
        %v382 = vld [vmem:[#allocation5 + $0x144] sm:$0xf]
        %v383 = vld [vmem:[#allocation5 + $0x148] sm:$0xf]
        %v384 = vld [vmem:[#allocation5 + $0x14c] sm:$0xf]
        %v385 = vld [vmem:[#allocation5 + $0x150] sm:$0xf]
        %v386 = vld [vmem:[#allocation5 + $0x154] sm:$0xf]
        %v387 = vld [vmem:[#allocation5 + $0x158] sm:$0xf]
        %v388 = vld [vmem:[#allocation5 + $0x15c] sm:$0xf]
        %v389 = vld [vmem:[#allocation5 + $0x160] sm:$0xf]
        %v390 = vld [vmem:[#allocation5 + $0x164] sm:$0xf]
        %v391 = vld [vmem:[#allocation5 + $0x168] sm:$0xf]
        %v392 = vld [vmem:[#allocation5 + $0x16c] sm:$0xf]
        %v393 = vld [vmem:[#allocation5 + $0x170] sm:$0xf]
        %v394 = vld [vmem:[#allocation5 + $0x174] sm:$0xf]
        %v395 = vld [vmem:[#allocation5 + $0x178] sm:$0xf]
        %v396 = vld [vmem:[#allocation5 + $0x17c] sm:$0xf]
        %v397 = vld [vmem:[#allocation5 + $0x180] sm:$0xf]
        %v398 = vld [vmem:[#allocation5 + $0x184] sm:$0xf]
        %v399 = vld [vmem:[#allocation5 + $0x188] sm:$0xf]
        %v400 = vld [vmem:[#allocation5 + $0x18c] sm:$0xf]
        %v401 = vld [vmem:[#allocation5 + $0x190] sm:$0xf]
        %v402 = vld [vmem:[#allocation5 + $0x194] sm:$0xf]
        %v403 = vld [vmem:[#allocation5 + $0x198] sm:$0xf]
        %v404 = vld [vmem:[#allocation5 + $0x19c] sm:$0xf]
        %v405 = vld [vmem:[#allocation5 + $0x1a0] sm:$0xf]
        %v406 = vld [vmem:[#allocation5 + $0x1a4] sm:$0xf]
        %v407 = vld [vmem:[#allocation5 + $0x1a8] sm:$0xf]
        %v408 = vld [vmem:[#allocation5 + $0x1ac] sm:$0xf]
        %v409 = vld [vmem:[#allocation5 + $0x1b0] sm:$0xf]
        %v410 = vld [vmem:[#allocation5 + $0x1b4] sm:$0xf]
        %v411 = vld [vmem:[#allocation5 + $0x1b8] sm:$0xf]
        %v412 = vld [vmem:[#allocation5 + $0x1bc] sm:$0xf]
        %v413 = vld [vmem:[#allocation5 + $0x1c0] sm:$0xf]
        %v414 = vld [vmem:[#allocation5 + $0x1c4] sm:$0xf]
        %v415 = vld [vmem:[#allocation5 + $0x1c8] sm:$0xf]
        %v416 = vld [vmem:[#allocation5 + $0x1cc] sm:$0xf]
        %v417 = vld [vmem:[#allocation5 + $0x1d0] sm:$0xf]
        %v418 = vld [vmem:[#allocation5 + $0x1d4] sm:$0xf]
        %v419 = vld [vmem:[#allocation5 + $0x1d8] sm:$0xf]
        %v420 = vld [vmem:[#allocation5 + $0x1dc] sm:$0xf]
        %v421 = vld [vmem:[#allocation5 + $0x1e0] sm:$0xf]
        %v422 = vld [vmem:[#allocation5 + $0x1e4] sm:$0xf]
        %v423 = vld [vmem:[#allocation5 + $0x1e8] sm:$0xf]
        %v424 = vld [vmem:[#allocation5 + $0x1ec] sm:$0xf]
        %v425 = vld [vmem:[#allocation5 + $0x1f0] sm:$0xf]
        %v426 = vld [vmem:[#allocation5 + $0x1f4] sm:$0xf]
        %v427 = vld [vmem:[#allocation5 + $0x1f8] sm:$0xf]
        %v428 = vld [vmem:[#allocation5 + $0x1fc] sm:$0xf]
        %v429 = vld [vmem:[%s2] sm:$0x1]
        %v431 = vlaneseq
        %v432 = vshrl.u32 %v431, 7
        %v433 = vsub.s32 0, %v432
        %v434 = vrot.slane %v429, %v433
        %v564 = vunpack.c.l.b16 %v301
        %v565 = vunpack.c.l.b16 %v302
        %v566 = vunpack.c.l.b16 %v303
        %v567 = vunpack.c.l.b16 %v304
        %v568 = vunpack.c.l.b16 %v305
        %v569 = vunpack.c.l.b16 %v306
        %v570 = vunpack.c.l.b16 %v307
        %v571 = vunpack.c.l.b16 %v308
        %v572 = vunpack.c.l.b16 %v309
        %v573 = vunpack.c.l.b16 %v310
        %v574 = vunpack.c.l.b16 %v311
        %v575 = vunpack.c.l.b16 %v312
        %v576 = vunpack.c.l.b16 %v313
        %v577 = vunpack.c.l.b16 %v314
        %v578 = vunpack.c.l.b16 %v315
        %v579 = vunpack.c.l.b16 %v316
        %v580 = vunpack.c.l.b16 %v317
        %v581 = vunpack.c.l.b16 %v318
        %v582 = vunpack.c.l.b16 %v319
        %v583 = vunpack.c.l.b16 %v320
        %v584 = vunpack.c.l.b16 %v321
        %v585 = vunpack.c.l.b16 %v322
        %v586 = vunpack.c.l.b16 %v323
        %v587 = vunpack.c.l.b16 %v324
        %v588 = vunpack.c.l.b16 %v325
        %v589 = vunpack.c.l.b16 %v326
        %v590 = vunpack.c.l.b16 %v327
        %v591 = vunpack.c.l.b16 %v328
        %v592 = vunpack.c.l.b16 %v329
        %v593 = vunpack.c.l.b16 %v330
        %v594 = vunpack.c.l.b16 %v331
        %v595 = vunpack.c.l.b16 %v332
        %v596 = vunpack.c.l.b16 %v333
        %v597 = vunpack.c.l.b16 %v334
        %v598 = vunpack.c.l.b16 %v335
        %v599 = vunpack.c.l.b16 %v336
        %v600 = vunpack.c.l.b16 %v337
        %v601 = vunpack.c.l.b16 %v338
        %v602 = vunpack.c.l.b16 %v339
        %v603 = vunpack.c.l.b16 %v340
        %v604 = vunpack.c.l.b16 %v341
        %v605 = vunpack.c.l.b16 %v342
        %v606 = vunpack.c.l.b16 %v343
        %v607 = vunpack.c.l.b16 %v344
        %v608 = vunpack.c.l.b16 %v345
        %v609 = vunpack.c.l.b16 %v346
        %v610 = vunpack.c.l.b16 %v347
        %v611 = vunpack.c.l.b16 %v348
        %v612 = vunpack.c.l.b16 %v349
        %v613 = vunpack.c.l.b16 %v350
        %v614 = vunpack.c.l.b16 %v351
        %v615 = vunpack.c.l.b16 %v352
        %v616 = vunpack.c.l.b16 %v353
        %v617 = vunpack.c.l.b16 %v354
        %v618 = vunpack.c.l.b16 %v355
        %v619 = vunpack.c.l.b16 %v356
        %v620 = vunpack.c.l.b16 %v357
        %v621 = vunpack.c.l.b16 %v358
        %v622 = vunpack.c.l.b16 %v359
        %v623 = vunpack.c.l.b16 %v360
        %v624 = vunpack.c.l.b16 %v361
        %v625 = vunpack.c.l.b16 %v362
        %v626 = vunpack.c.l.b16 %v363
        %v627 = vunpack.c.l.b16 %v364
        %v628 = vunpack.c.l.b16 %v365
        %v629 = vunpack.c.l.b16 %v366
        %v630 = vunpack.c.l.b16 %v367
        %v631 = vunpack.c.l.b16 %v368
        %v632 = vunpack.c.l.b16 %v369
        %v633 = vunpack.c.l.b16 %v370
        %v634 = vunpack.c.l.b16 %v371
        %v635 = vunpack.c.l.b16 %v372
        %v636 = vunpack.c.l.b16 %v373
        %v637 = vunpack.c.l.b16 %v374
        %v638 = vunpack.c.l.b16 %v375
        %v639 = vunpack.c.l.b16 %v376
        %v640 = vunpack.c.l.b16 %v377
        %v641 = vunpack.c.l.b16 %v378
        %v642 = vunpack.c.l.b16 %v379
        %v643 = vunpack.c.l.b16 %v380
        %v644 = vunpack.c.l.b16 %v381
        %v645 = vunpack.c.l.b16 %v382
        %v646 = vunpack.c.l.b16 %v383
        %v647 = vunpack.c.l.b16 %v384
        %v648 = vunpack.c.l.b16 %v385
        %v649 = vunpack.c.l.b16 %v386
        %v650 = vunpack.c.l.b16 %v387
        %v651 = vunpack.c.l.b16 %v388
        %v652 = vunpack.c.l.b16 %v389
        %v653 = vunpack.c.l.b16 %v390
        %v654 = vunpack.c.l.b16 %v391
        %v655 = vunpack.c.l.b16 %v392
        %v656 = vunpack.c.l.b16 %v393
        %v657 = vunpack.c.l.b16 %v394
        %v658 = vunpack.c.l.b16 %v395
        %v659 = vunpack.c.l.b16 %v396
        %v660 = vunpack.c.l.b16 %v397
        %v661 = vunpack.c.l.b16 %v398
        %v662 = vunpack.c.l.b16 %v399
        %v663 = vunpack.c.l.b16 %v400
        %v664 = vunpack.c.l.b16 %v401
        %v665 = vunpack.c.l.b16 %v402
        %v666 = vunpack.c.l.b16 %v403
        %v667 = vunpack.c.l.b16 %v404
        %v668 = vunpack.c.l.b16 %v405
        %v669 = vunpack.c.l.b16 %v406
        %v670 = vunpack.c.l.b16 %v407
        %v671 = vunpack.c.l.b16 %v408
        %v672 = vunpack.c.l.b16 %v409
        %v673 = vunpack.c.l.b16 %v410
        %v674 = vunpack.c.l.b16 %v411
        %v675 = vunpack.c.l.b16 %v412
        %v676 = vunpack.c.l.b16 %v413
        %v677 = vunpack.c.l.b16 %v414
        %v678 = vunpack.c.l.b16 %v415
        %v679 = vunpack.c.l.b16 %v416
        %v680 = vunpack.c.l.b16 %v417
        %v681 = vunpack.c.l.b16 %v418
        %v682 = vunpack.c.l.b16 %v419
        %v683 = vunpack.c.l.b16 %v420
        %v684 = vunpack.c.l.b16 %v421
        %v685 = vunpack.c.l.b16 %v422
        %v686 = vunpack.c.l.b16 %v423
        %v687 = vunpack.c.l.b16 %v424
        %v688 = vunpack.c.l.b16 %v425
        %v689 = vunpack.c.l.b16 %v426
        %v690 = vunpack.c.l.b16 %v427
        %v691 = vunpack.c.l.b16 %v428
        %v692 = vpack.c.b16 %v565, %v564
        %v693 = vpack.c.b16 %v567, %v566
        %v694 = vpack.c.b16 %v569, %v568
        %v695 = vpack.c.b16 %v571, %v570
        %v696 = vpack.c.b16 %v573, %v572
        %v697 = vpack.c.b16 %v575, %v574
        %v698 = vpack.c.b16 %v577, %v576
        %v699 = vpack.c.b16 %v579, %v578
        %v700 = vpack.c.b16 %v581, %v580
        %v701 = vpack.c.b16 %v583, %v582
        %v702 = vpack.c.b16 %v585, %v584
        %v703 = vpack.c.b16 %v587, %v586
        %v704 = vpack.c.b16 %v589, %v588
        %v705 = vpack.c.b16 %v591, %v590
        %v706 = vpack.c.b16 %v593, %v592
        %v707 = vpack.c.b16 %v595, %v594
        %v708 = vpack.c.b16 %v597, %v596
        %v709 = vpack.c.b16 %v599, %v598
        %v710 = vpack.c.b16 %v601, %v600
        %v711 = vpack.c.b16 %v603, %v602
        %v712 = vpack.c.b16 %v605, %v604
        %v713 = vpack.c.b16 %v607, %v606
        %v714 = vpack.c.b16 %v609, %v608
        %v715 = vpack.c.b16 %v611, %v610
        %v716 = vpack.c.b16 %v613, %v612
        %v717 = vpack.c.b16 %v615, %v614
        %v718 = vpack.c.b16 %v617, %v616
        %v719 = vpack.c.b16 %v619, %v618
        %v720 = vpack.c.b16 %v621, %v620
        %v721 = vpack.c.b16 %v623, %v622
        %v722 = vpack.c.b16 %v625, %v624
        %v723 = vpack.c.b16 %v627, %v626
        %v724 = vpack.c.b16 %v629, %v628
        %v725 = vpack.c.b16 %v631, %v630
        %v726 = vpack.c.b16 %v633, %v632
        %v727 = vpack.c.b16 %v635, %v634
        %v728 = vpack.c.b16 %v637, %v636
        %v729 = vpack.c.b16 %v639, %v638
        %v730 = vpack.c.b16 %v641, %v640
        %v731 = vpack.c.b16 %v643, %v642
        %v732 = vpack.c.b16 %v645, %v644
        %v733 = vpack.c.b16 %v647, %v646
        %v734 = vpack.c.b16 %v649, %v648
        %v735 = vpack.c.b16 %v651, %v650
        %v736 = vpack.c.b16 %v653, %v652
        %v737 = vpack.c.b16 %v655, %v654
        %v738 = vpack.c.b16 %v657, %v656
        %v739 = vpack.c.b16 %v659, %v658
        %v740 = vpack.c.b16 %v661, %v660
        %v741 = vpack.c.b16 %v663, %v662
        %v742 = vpack.c.b16 %v665, %v664
        %v743 = vpack.c.b16 %v667, %v666
        %v744 = vpack.c.b16 %v669, %v668
        %v745 = vpack.c.b16 %v671, %v670
        %v746 = vpack.c.b16 %v673, %v672
        %v747 = vpack.c.b16 %v675, %v674
        %v748 = vpack.c.b16 %v677, %v676
        %v749 = vpack.c.b16 %v679, %v678
        %v750 = vpack.c.b16 %v681, %v680
        %v751 = vpack.c.b16 %v683, %v682
        %v752 = vpack.c.b16 %v685, %v684
        %v753 = vpack.c.b16 %v687, %v686
        %v754 = vpack.c.b16 %v689, %v688
        %v755 = vpack.c.b16 %v691, %v690
        %820 = vmatprep.subr.bf16.mxu0 0
        %821 = vmatpush1.bf16.msra.mxu0 %v692
        %822 = vmatprep.subr.bf16.mxu0 0
        %823 = vmatpush1.bf16.msra.mxu0 %v693
        %824 = vmatprep.subr.bf16.mxu0 0
        %825 = vmatpush1.bf16.msra.mxu0 %v694
        %826 = vmatprep.subr.bf16.mxu0 0
        %827 = vmatpush1.bf16.msra.mxu0 %v695
        %828 = vmatprep.subr.bf16.mxu0 0
        %829 = vmatpush1.bf16.msra.mxu0 %v696
        %830 = vmatprep.subr.bf16.mxu0 0
        %831 = vmatpush1.bf16.msra.mxu0 %v697
        %832 = vmatprep.subr.bf16.mxu0 0
        %833 = vmatpush1.bf16.msra.mxu0 %v698
        %834 = vmatprep.subr.bf16.mxu0 0
        %835 = vmatpush1.bf16.msra.mxu0 %v699
        %836 = vmatprep.subr.bf16.mxu0 0
        %837 = vmatpush1.bf16.msra.mxu0 %v700
        %838 = vmatprep.subr.bf16.mxu0 0
        %839 = vmatpush1.bf16.msra.mxu0 %v701
        %840 = vmatprep.subr.bf16.mxu0 0
        %841 = vmatpush1.bf16.msra.mxu0 %v702
        %842 = vmatprep.subr.bf16.mxu0 0
        %843 = vmatpush1.bf16.msra.mxu0 %v703
        %844 = vmatprep.subr.bf16.mxu0 0
        %845 = vmatpush1.bf16.msra.mxu0 %v704
        %846 = vmatprep.subr.bf16.mxu0 0
        %847 = vmatpush1.bf16.msra.mxu0 %v705
        %848 = vmatprep.subr.bf16.mxu0 0
        %849 = vmatpush1.bf16.msra.mxu0 %v706
        %850 = vmatprep.subr.bf16.mxu0 0
        %851 = vmatpush1.bf16.msra.mxu0 %v707
        %852 = vmatprep.mubr.bf16.mxu0 %v294
        %853 = vmatmul.mubr.bf16.gmra.mrb[0].mxu0 %v293
        %v854 = vpop.f32.mrb[0].mxu0
        %v855 = vadd.f32 %v434, %v854
        %v856 = vpop.f32.mrb[0].mxu0
        %v857 = vpop.f32.mrb[0].mxu0
        %v858 = vpop.f32.mrb[0].mxu0
        %859 = vdwg.mxu0
        %860 = vmatprep.subr.bf16.mxu0 0
        %861 = vmatpush1.bf16.msra.mxu0 %v708
        %862 = vmatprep.subr.bf16.mxu0 0
        %863 = vmatpush1.bf16.msra.mxu0 %v709
        %864 = vmatprep.subr.bf16.mxu0 0
        %865 = vmatpush1.bf16.msra.mxu0 %v710
        %866 = vmatprep.subr.bf16.mxu0 0
        %867 = vmatpush1.bf16.msra.mxu0 %v711
        %868 = vmatprep.subr.bf16.mxu0 0
        %869 = vmatpush1.bf16.msra.mxu0 %v712
        %870 = vmatprep.subr.bf16.mxu0 0
        %871 = vmatpush1.bf16.msra.mxu0 %v713
        %872 = vmatprep.subr.bf16.mxu0 0
        %873 = vmatpush1.bf16.msra.mxu0 %v714
        %874 = vmatprep.subr.bf16.mxu0 0
        %875 = vmatpush1.bf16.msra.mxu0 %v715
        %876 = vmatprep.subr.bf16.mxu0 0
        %877 = vmatpush1.bf16.msra.mxu0 %v716
        %878 = vmatprep.subr.bf16.mxu0 0
        %879 = vmatpush1.bf16.msra.mxu0 %v717
        %880 = vmatprep.subr.bf16.mxu0 0
        %881 = vmatpush1.bf16.msra.mxu0 %v718
        %882 = vmatprep.subr.bf16.mxu0 0
        %883 = vmatpush1.bf16.msra.mxu0 %v719
        %884 = vmatprep.subr.bf16.mxu0 0
        %885 = vmatpush1.bf16.msra.mxu0 %v720
        %886 = vmatprep.subr.bf16.mxu0 0
        %887 = vmatpush1.bf16.msra.mxu0 %v721
        %888 = vmatprep.subr.bf16.mxu0 0
        %889 = vmatpush1.bf16.msra.mxu0 %v722
        %890 = vmatprep.subr.bf16.mxu0 0
        %891 = vmatpush1.bf16.msra.mxu0 %v723
        %892 = vmatprep.mubr.bf16.mxu0 %v296
        %893 = vmatmul.mubr.bf16.gmra.mrb[0].mxu0 %v295
        %v894 = vpop.f32.mrb[0].mxu0
        %v895 = vadd.f32 %v855, %v894
        %v896 = vpop.f32.mrb[0].mxu0
        %v897 = vpop.f32.mrb[0].mxu0
        %v898 = vpop.f32.mrb[0].mxu0
        %899 = vdwg.mxu0
        %900 = vmatprep.subr.bf16.mxu0 0
        %901 = vmatpush1.bf16.msra.mxu0 %v724
        %902 = vmatprep.subr.bf16.mxu0 0
        %903 = vmatpush1.bf16.msra.mxu0 %v725
        %904 = vmatprep.subr.bf16.mxu0 0
        %905 = vmatpush1.bf16.msra.mxu0 %v726
        %906 = vmatprep.subr.bf16.mxu0 0
        %907 = vmatpush1.bf16.msra.mxu0 %v727
        %908 = vmatprep.subr.bf16.mxu0 0
        %909 = vmatpush1.bf16.msra.mxu0 %v728
        %910 = vmatprep.subr.bf16.mxu0 0
        %911 = vmatpush1.bf16.msra.mxu0 %v729
        %912 = vmatprep.subr.bf16.mxu0 0
        %913 = vmatpush1.bf16.msra.mxu0 %v730
        %914 = vmatprep.subr.bf16.mxu0 0
        %915 = vmatpush1.bf16.msra.mxu0 %v731
        %916 = vmatprep.subr.bf16.mxu0 0
        %917 = vmatpush1.bf16.msra.mxu0 %v732
        %918 = vmatprep.subr.bf16.mxu0 0
        %919 = vmatpush1.bf16.msra.mxu0 %v733
        %920 = vmatprep.subr.bf16.mxu0 0
        %921 = vmatpush1.bf16.msra.mxu0 %v734
        %922 = vmatprep.subr.bf16.mxu0 0
        %923 = vmatpush1.bf16.msra.mxu0 %v735
        %924 = vmatprep.subr.bf16.mxu0 0
        %925 = vmatpush1.bf16.msra.mxu0 %v736
        %926 = vmatprep.subr.bf16.mxu0 0
        %927 = vmatpush1.bf16.msra.mxu0 %v737
        %928 = vmatprep.subr.bf16.mxu0 0
        %929 = vmatpush1.bf16.msra.mxu0 %v738
        %930 = vmatprep.subr.bf16.mxu0 0
        %931 = vmatpush1.bf16.msra.mxu0 %v739
        %932 = vmatprep.mubr.bf16.mxu0 %v298
        %933 = vmatmul.mubr.bf16.gmra.mrb[0].mxu0 %v297
        %v934 = vpop.f32.mrb[0].mxu0
        %v935 = vadd.f32 %v895, %v934
        %v936 = vpop.f32.mrb[0].mxu0
        %v937 = vpop.f32.mrb[0].mxu0
        %v938 = vpop.f32.mrb[0].mxu0
        %939 = vdwg.mxu0
        %940 = vmatprep.subr.bf16.mxu0 0
        %941 = vmatpush1.bf16.msra.mxu0 %v740
        %942 = vmatprep.subr.bf16.mxu0 0
        %943 = vmatpush1.bf16.msra.mxu0 %v741
        %944 = vmatprep.subr.bf16.mxu0 0
        %945 = vmatpush1.bf16.msra.mxu0 %v742
        %946 = vmatprep.subr.bf16.mxu0 0
        %947 = vmatpush1.bf16.msra.mxu0 %v743
        %948 = vmatprep.subr.bf16.mxu0 0
        %949 = vmatpush1.bf16.msra.mxu0 %v744
        %950 = vmatprep.subr.bf16.mxu0 0
        %951 = vmatpush1.bf16.msra.mxu0 %v745
        %952 = vmatprep.subr.bf16.mxu0 0
        %953 = vmatpush1.bf16.msra.mxu0 %v746
        %954 = vmatprep.subr.bf16.mxu0 0
        %955 = vmatpush1.bf16.msra.mxu0 %v747
        %956 = vmatprep.subr.bf16.mxu0 0
        %957 = vmatpush1.bf16.msra.mxu0 %v748
        %958 = vmatprep.subr.bf16.mxu0 0
        %959 = vmatpush1.bf16.msra.mxu0 %v749
        %960 = vmatprep.subr.bf16.mxu0 0
        %961 = vmatpush1.bf16.msra.mxu0 %v750
        %962 = vmatprep.subr.bf16.mxu0 0
        %963 = vmatpush1.bf16.msra.mxu0 %v751
        %964 = vmatprep.subr.bf16.mxu0 0
        %965 = vmatpush1.bf16.msra.mxu0 %v752
        %966 = vmatprep.subr.bf16.mxu0 0
        %967 = vmatpush1.bf16.msra.mxu0 %v753
        %968 = vmatprep.subr.bf16.mxu0 0
        %969 = vmatpush1.bf16.msra.mxu0 %v754
        %970 = vmatprep.subr.bf16.mxu0 0
        %971 = vmatpush1.bf16.msra.mxu0 %v755
        %972 = vmatprep.mubr.bf16.mxu0 %v300
        %973 = vmatmul.mubr.bf16.gmra.mrb[0].mxu0 %v299
        %v974 = vpop.f32.mrb[0].mxu0
        %v975 = vadd.f32 %v935, %v974
        %v976 = vpop.f32.mrb[0].mxu0
        %v977 = vpop.f32.mrb[0].mxu0
        %v978 = vpop.f32.mrb[0].mxu0
        %979 = vdwg.mxu0
        %v980 = vlaneseq
        %v981 = vand.u32 %v980, 127
        %vm982 = vcmp.lt.s32.totalorder %v981, 10
        %v983 = vsel %vm982, %v975, -1e+30
        %v984 = vld [vmem:[%s283] sm:$0xff]
        %985 = vset.pattern.permute.xlu0 0
        %986 = vperm.xlu0 %985, %v984
        %v987 = vpop.permute.xlu0 %986
        %vm988 = vcmp.eq.s32.totalorder %v981, %v987
        %989 = vmax.xlane.f32.xlu0 %v983
        %v990 = vpop.xlane.xlu0 %989
        %v991 = vsub.f32 %v983, %v990
        %v992 = vmul.f32 %v991, 1.442695
        %v993 = vpow.pop %v992
        %994 = vadd.xlane.f32.xlu0 %v993
        %v995 = vpop.xlane.xlu0 %994
        %v996 = vlog2.pop %v995
        %v997 = vmul.f32 %v996, 0.6931472
        %v998 = vadd.f32 %v997, %v990
        %v999 = vsel %vm988, %v983, 0.0
        %1000 = vadd.xlane.f32.xlu0 %v999
        %v1001 = vpop.xlane.xlu0 %1000
        %v1002 = vsub.f32 %v998, %v1001
        %v1003 = vlaneseq
        %v1004 = vshrl.u32 %v1003, 7
        %s1005 = smul.u32 %s27, 8
        %v1006 = vstv %s1005
        %v1007 = vadd.s32 %v1004, %v1006
        %vm1008 = vcmp.lt.s32.totalorder %v1007, 16
        %v1009 = vsel %vm1008, %v1002, 0.0
        %vm1010 = vcmp.ge.f32.partialorder %v1001, %v990
        %vm1011 = vmand %vm1008, %vm1010
        %v1012 = vsel %vm1011, 1.0, 0.0
        %vm1013 = vcmask 7168
        %v1014 = vsel %vm1013, %v1009, 0.0
        %1015 = vadd.xlane.f32.xlu0 %v1014
        %v1016 = vpop.xlane.xlu0 %1015
        %v1017 = vrot.slane %v1016, 4
        %v1018 = vadd.f32 %v1016, %v1017
        %v1019 = vrot.slane %v1018, 2
        %v1020 = vadd.f32 %v1018, %v1019
        %v1021 = vrot.slane %v1020, 1
        %v1022 = vadd.f32 %v1020, %v1021
        %s1023 = vtos %v1022
        %v1024 = vstv %s1023
        %1025 = vst [vmem:[%s272] sm:$0xff] %v1024
        %v1026 = vsel %vm1013, %v1012, 0.0
        %1027 = vadd.xlane.f32.xlu0 %v1026
        %v1028 = vpop.xlane.xlu0 %1027
        %v1029 = vrot.slane %v1028, 4
        %v1030 = vadd.f32 %v1028, %v1029
        %v1031 = vrot.slane %v1030, 2
        %v1032 = vadd.f32 %v1030, %v1031
        %v1033 = vrot.slane %v1032, 1
        %v1034 = vadd.f32 %v1032, %v1033
        %s1035 = vtos %v1034
        %v1036 = vstv %s1035
        %1037 = vst [vmem:[%s279] sm:$0xff] %v1036
        %s1038 = sand.u32 %s129, 1
        %s1039 = scalar_lea.sflag [#allocation4], %s1038
        %s1040 = sand.u32 %s129, 1
        %s1041 = smul.addr %s1040, 8
        %s1042 = scalar_lea.vmem [#allocation7], %s1041
        %s1043 = sand.u32 %s155, 1
        %s1044 = scalar_lea.sflag [#allocation9], %s1043
        %s1045 = sand.u32 %s155, 1
        %s1046 = smul.addr %s1045, 8
        %s1047 = scalar_lea.vmem [#allocation8], %s1046
        // Predicated region
        $region45: #{tpu_custom_call.1} parent=35 // pred_check
          %p1048 = pneg %p139
        $region46: #{tpu_custom_call.1} parent=35 // pred_check_branch
          %1050 = sbr.rel (%p1048) target = $region48
        $region47: #{tpu_custom_call.1} parent=35 // pred_region
          %s1052 = ssub.s32 128, 128
          %1053 = vsyncadd %s1039, %s1052
          %s1054 = smul.addr %s27, 128
          %s1055 = scalar_lea.hbm %s4, %s1054
          %s1057 = sshll.u32 %s1042, 4
          %s1058 = int_to_ptr.vmem [resolvable:$true] %s1057
          %1060 = dma.vmem_to_hbm [thread:$0]  %s1058, 128, %s1055, %s1039
        $region48: #{tpu_custom_call.1} parent=35 // pred_fallthru
          _
        // Predicated region
        $region49: #{tpu_custom_call.1} parent=35 // pred_check
          %p1061 = pneg %p165
        $region50: #{tpu_custom_call.1} parent=35 // pred_check_branch
          %1063 = sbr.rel (%p1061) target = $region52
        $region51: #{tpu_custom_call.1} parent=35 // pred_region
          %s1065 = ssub.s32 128, 128
          %1066 = vsyncadd %s1044, %s1065
          %s1067 = smul.addr %s27, 128
          %s1068 = scalar_lea.hbm %s5, %s1067
          %s1070 = sshll.u32 %s1047, 4
          %s1071 = int_to_ptr.vmem [resolvable:$true] %s1070
          %1073 = dma.vmem_to_hbm [thread:$0]  %s1071, 128, %s1068, %s1044
        $region52: #{tpu_custom_call.1} parent=35 // pred_fallthru
          _
      $region36: #{tpu_custom_call.1} parent=5 // pred_fallthru
        _
      %p1074 = scmp.le.s32.totalorder 2, %s22
      // Predicated region
      $region53: #{tpu_custom_call.1} parent=5 // pred_check
        %p1075 = pneg %p1074
      $region54: #{tpu_custom_call.1} parent=5 // pred_check_branch
        %1077 = sbr.rel (%p1075) target = $region56
      $region55: #{tpu_custom_call.1} parent=5 // pred_region
        %s1078 = ssub.s32 %s22, 2
        // Predicated region
        $region57: #{tpu_custom_call.1} parent=55 // pred_check
          %p1079 = pneg %p145
        $region58: #{tpu_custom_call.1} parent=55 // pred_check_branch
          %1081 = sbr.rel (%p1079) target = $region60
        $region59: #{tpu_custom_call.1} parent=55 // pred_region
          %s1082 = sand.u32 %s130, 1
          %s1083 = scalar_lea.sflag [#allocation4], %s1082
          %s1084 = sand.u32 %s130, 1
          %s1085 = smul.addr %s1084, 8
          %s1086 = scalar_lea.vmem [#allocation7], %s1085
          %1087 = dma.done %s1083, 128
        $region60: #{tpu_custom_call.1} parent=55 // pred_fallthru
          _
        // Predicated region
        $region61: #{tpu_custom_call.1} parent=55 // pred_check
          %p1088 = pneg %p171
        $region62: #{tpu_custom_call.1} parent=55 // pred_check_branch
          %1090 = sbr.rel (%p1088) target = $region64
        $region63: #{tpu_custom_call.1} parent=55 // pred_region
          %s1091 = sand.u32 %s156, 1
          %s1092 = scalar_lea.sflag [#allocation9], %s1091
          %s1093 = sand.u32 %s156, 1
          %s1094 = smul.addr %s1093, 8
          %s1095 = scalar_lea.vmem [#allocation8], %s1094
          %1096 = dma.done %s1092, 128
        $region64: #{tpu_custom_call.1} parent=55 // pred_fallthru
          _
      $region56: #{tpu_custom_call.1} parent=5 // pred_fallthru
        _
    $region6: #{tpu_custom_call.1} parent=1 // loop_footer
      %s26 = sadd.s32 1, %s22
    $region7: #{tpu_custom_call.1} parent=1 // loop_footer_branch
      %21 = sbr.rel target = $region3
    $region8: #{tpu_custom_call.1} parent=1 // loop_exit
      _
    %1097 = vsyncpa [#allocation3], 1
    %s1098 = scalar_lea.sflag [#allocation3], 1
    %1099 = vsyncpa %s1098, 1
    %1100 = vsyncpa [#allocation6], 1
    %1101 = vsyncpa [#allocation4], 1
    %s1102 = scalar_lea.sflag [#allocation4], 1
    %1103 = vsyncpa %s1102, 1
    %1104 = vsyncpa [#allocation9], 1
    %s1105 = scalar_lea.sflag [#allocation9], 1
    %1106 = vsyncpa %s1105, 1

</llo_original>
